<compile_context>
chip_gen: v7x
topology: tpu7x:2x2x1
jax: 0.10.0
libtpu: 0.0.40
codegen_flags: <defaults>
</compile_context>

<pallas_src>
import functools

import jax
import jax.numpy as jnp
from jax.experimental import pallas as pl
from jax.experimental.pallas import tpu as pltpu


def _round_up(n, m):
    return ((n + m - 1) // m) * m


def _tinymlp_kernel(x_ref, w1_ref, b1_ref, w2_ref, b2_ref,
                    w3_ref, b3_ref, w4_ref, b4_ref, o_ref):
    # fc1 + ReLU   (bf16 MXU inputs, f32 accumulation, f32 epilogue)
    h = jnp.dot(x_ref[...], w1_ref[...], preferred_element_type=jnp.float32)
    h = jnp.maximum(h + b1_ref[...], 0.0)
    # fc2 + ReLU   (in the torch module the ReLU comes right after the probe
    # branch; with probe_mode=False the returned value is identical)
    h = jnp.dot(h.astype(w2_ref.dtype), w2_ref[...],
                preferred_element_type=jnp.float32)
    h = jnp.maximum(h + b2_ref[...], 0.0)
    # fc3 + ReLU
    h = jnp.dot(h.astype(w3_ref.dtype), w3_ref[...],
                preferred_element_type=jnp.float32)
    h = jnp.maximum(h + b3_ref[...], 0.0)
    # fc4 (no activation), bias add + store in f32 (lane-dense output tile)
    out = jnp.dot(h.astype(w4_ref.dtype), w4_ref[...],
                  preferred_element_type=jnp.float32)
    o_ref[...] = (out + b4_ref[...]).astype(o_ref.dtype)


@functools.partial(jax.jit)
def tiny_mlp_forward(x, params):
    """Pallas equivalent of TinyMLP.forward (probe_mode=False).

    x      : [B, ...] arbitrary trailing dims, flattened like x.view(B, -1)
    params : dict with torch-layout weights w1..w4 ([out, in]) and biases
             b1..b4 ([out]).
    returns [B, output_size] float32
    """
    batch = x.shape[0]
    x2d = x.reshape(batch, -1)
    in_dim = x2d.shape[1]
    h1 = params["w1"].shape[0]
    h2 = params["w2"].shape[0]
    h3 = params["w3"].shape[0]
    out_dim = params["w4"].shape[0]
    assert params["w1"].shape[1] == in_dim

    # Pad batch to a multiple of 8 (sublanes) and the output dim to a multiple
    # of 128 (lanes) so the output store is an unmasked, lane-dense vst.
    bp = _round_up(batch, 8)
    np_ = _round_up(out_dim, 128)

    # bf16 MXU inputs (halves the dominant W1 DMA); biases stay f32.
    xp = jnp.zeros((bp, in_dim), jnp.bfloat16).at[:batch].set(
        x2d.astype(jnp.bfloat16))
    w1 = params["w1"].T.astype(jnp.bfloat16)                       # [in, h1]
    w2 = params["w2"].T.astype(jnp.bfloat16)                       # [h1, h2]
    w3 = params["w3"].T.astype(jnp.bfloat16)                       # [h2, h3]
    w4 = jnp.zeros((h3, np_), jnp.bfloat16).at[:, :out_dim].set(
        params["w4"].T.astype(jnp.bfloat16))                       # [h3, np_]
    b1 = params["b1"].reshape(1, h1).astype(jnp.float32)
    b2 = params["b2"].reshape(1, h2).astype(jnp.float32)
    b3 = params["b3"].reshape(1, h3).astype(jnp.float32)
    b4 = jnp.zeros((1, np_), jnp.float32).at[:, :out_dim].set(
        params["b4"].reshape(1, out_dim).astype(jnp.float32))

    out = pl.pallas_call(
        _tinymlp_kernel,
        out_shape=jax.ShapeDtypeStruct((bp, np_), jnp.float32),
        grid_spec=pltpu.PrefetchScalarGridSpec(
            num_scalar_prefetch=0,
            grid=(1,),
            in_specs=[
                pl.BlockSpec((bp, in_dim), lambda i: (0, 0)),
                pl.BlockSpec((in_dim, h1), lambda i: (0, 0)),
                pl.BlockSpec((1, h1), lambda i: (0, 0)),
                pl.BlockSpec((h1, h2), lambda i: (0, 0)),
                pl.BlockSpec((1, h2), lambda i: (0, 0)),
                pl.BlockSpec((h2, h3), lambda i: (0, 0)),
                pl.BlockSpec((1, h3), lambda i: (0, 0)),
                pl.BlockSpec((h3, np_), lambda i: (0, 0)),
                pl.BlockSpec((1, np_), lambda i: (0, 0)),
            ],
            out_specs=pl.BlockSpec((bp, np_), lambda i: (0, 0)),
        ),
        compiler_params=pltpu.CompilerParams(
            # Whole fused layer is < 100 KiB; 8 MiB is safe on v5e/v6e/v7x.
            vmem_limit_bytes=8 * 1024 * 1024,
        ),
    )(xp, w1, b1, w2, b2, w3, b3, w4, b4)

    return out[:batch, :out_dim]


def _ref_forward(x, params):
    """Plain-JAX reference with the same bf16-input / f32-accumulate scheme."""
    batch = x.shape[0]
    h = x.reshape(batch, -1).astype(jnp.bfloat16)
    h = jnp.maximum(
        jnp.dot(h, params["w1"].T.astype(jnp.bfloat16),
                preferred_element_type=jnp.float32) + params["b1"], 0.0)
    h = jnp.maximum(
        jnp.dot(h.astype(jnp.bfloat16), params["w2"].T.astype(jnp.bfloat16),
                preferred_element_type=jnp.float32) + params["b2"], 0.0)
    h = jnp.maximum(
        jnp.dot(h.astype(jnp.bfloat16), params["w3"].T.astype(jnp.bfloat16),
                preferred_element_type=jnp.float32) + params["b3"], 0.0)
    return (jnp.dot(h.astype(jnp.bfloat16), params["w4"].T.astype(jnp.bfloat16),
                    preferred_element_type=jnp.float32) + params["b4"])


if __name__ == "__main__":
    key = jax.random.PRNGKey(0)

    # Small shapes consistent with the module: x [2, 4, 16, 16] -> input_size=1024
    B, C, H, W = 2, 4, 16, 16
    input_size = C * H * W            # 1024
    hidden = 20
    output_size = 10

    k_x, k_params = jax.random.split(key, 2)
    x = jax.random.normal(k_x, (B, C, H, W), dtype=jnp.float32)

    # Deterministic PyTorch-style (uniform +/- 1/sqrt(fan_in)) parameter init.
    def linear_init(k, fan_in, fan_out):
        kw, kb = jax.random.split(k)
        bound = 1.0 / (fan_in ** 0.5)
        w = jax.random.uniform(kw, (fan_out, fan_in), minval=-bound,
                               maxval=bound, dtype=jnp.float32)
        b = jax.random.uniform(kb, (fan_out,), minval=-bound,
                               maxval=bound, dtype=jnp.float32)
        return w, b

    ks = jax.random.split(k_params, 4)
    w1, b1 = linear_init(ks[0], input_size, hidden)   # fc1: 1024 -> 20
    w2, b2 = linear_init(ks[1], hidden, hidden)       # fc2: 20 -> 20
    w3, b3 = linear_init(ks[2], hidden, hidden)       # fc3: 20 -> 20
    w4, b4 = linear_init(ks[3], hidden, output_size)  # fc4: 20 -> 10

    params = {"w1": w1, "b1": b1, "w2": w2, "b2": b2,
              "w3": w3, "b3": b3, "w4": w4, "b4": b4}

    y = tiny_mlp_forward(x, params)
    y = jax.block_until_ready(y)

    y_ref = _ref_forward(x, params)
    assert y.shape == (B, output_size)
    assert jnp.allclose(y, y_ref, atol=2e-3, rtol=2e-3)

    print("KERNEL_OK")
</pallas_src>

<mosaic_0001>
module attributes {stable_mosaic.version = 11 : i64} {
  func.func @_tinymlp_kernel(%arg0: i32, %arg1: memref<8x1024xbf16, #tpu.memory_space<vmem>>, %arg2: memref<1024x20xbf16, #tpu.memory_space<vmem>>, %arg3: memref<1x20xf32, #tpu.memory_space<vmem>>, %arg4: memref<20x20xbf16, #tpu.memory_space<vmem>>, %arg5: memref<1x20xf32, #tpu.memory_space<vmem>>, %arg6: memref<20x20xbf16, #tpu.memory_space<vmem>>, %arg7: memref<1x20xf32, #tpu.memory_space<vmem>>, %arg8: memref<20x128xbf16, #tpu.memory_space<vmem>>, %arg9: memref<1x128xf32, #tpu.memory_space<vmem>>, %arg10: memref<8x128xf32, #tpu.memory_space<vmem>>) attributes {dimension_semantics = [#tpu.dimension_semantics<arbitrary>], iteration_bounds = array<i64: 1>, scalar_prefetch = 0 : i64, scratch_operands = 0 : i64, tpu.core_type = #tpu.core_type<tc>, window_params = [{pipeline_mode = #tpu.pipeline_mode<synchronous>, transform_indices = @transform_0, window_bounds = array<i64: 8, 1024>}, {pipeline_mode = #tpu.pipeline_mode<synchronous>, transform_indices = @transform_1, window_bounds = array<i64: 1024, 20>}, {pipeline_mode = #tpu.pipeline_mode<synchronous>, transform_indices = @transform_2, window_bounds = array<i64: 1, 20>}, {pipeline_mode = #tpu.pipeline_mode<synchronous>, transform_indices = @transform_3, window_bounds = array<i64: 20, 20>}, {pipeline_mode = #tpu.pipeline_mode<synchronous>, transform_indices = @transform_4, window_bounds = array<i64: 1, 20>}, {pipeline_mode = #tpu.pipeline_mode<synchronous>, transform_indices = @transform_5, window_bounds = array<i64: 20, 20>}, {pipeline_mode = #tpu.pipeline_mode<synchronous>, transform_indices = @transform_6, window_bounds = array<i64: 1, 20>}, {pipeline_mode = #tpu.pipeline_mode<synchronous>, transform_indices = @transform_7, window_bounds = array<i64: 20, 128>}, {pipeline_mode = #tpu.pipeline_mode<synchronous>, transform_indices = @transform_8, window_bounds = array<i64: 1, 128>}, {pipeline_mode = #tpu.pipeline_mode<synchronous>, transform_indices = @transform_9, window_bounds = array<i64: 8, 128>}]} {
    %c0 = arith.constant 0 : index
    %c0_0 = arith.constant 0 : index
    %0 = vector.load %arg1[%c0, %c0_0] : memref<8x1024xbf16, #tpu.memory_space<vmem>>, vector<8x1024xbf16>
    %c0_1 = arith.constant 0 : index
    %c0_2 = arith.constant 0 : index
    %1 = vector.load %arg2[%c0_1, %c0_2] : memref<1024x20xbf16, #tpu.memory_space<vmem>>, vector<1024x20xbf16>
    %cst = arith.constant dense<0.000000e+00> : vector<8x20xf32>
    %2 = tpu.matmul %0, %1, %cst {dimension_numbers = #tpu.dot_dimension_numbers<[1], [0], [0], [1], [0, 0, 1, 1], [], []>} : vector<8x1024xbf16>, vector<1024x20xbf16>, vector<8x20xf32> -> vector<8x20xf32>
    %c0_3 = arith.constant 0 : index
    %c0_4 = arith.constant 0 : index
    %3 = vector.load %arg3[%c0_3, %c0_4] : memref<1x20xf32, #tpu.memory_space<vmem>>, vector<1x20xf32>
    %4 = vector.broadcast %3 : vector<1x20xf32> to vector<8x20xf32>
    %5 = arith.addf %2, %4 : vector<8x20xf32>
    %cst_5 = arith.constant 0.000000e+00 : f32
    %6 = vector.broadcast %cst_5 : f32 to vector<8x20xf32>
    %7 = arith.maximumf %5, %6 : vector<8x20xf32>
    %8 = arith.truncf %7 : vector<8x20xf32> to vector<8x20xbf16>
    %c0_6 = arith.constant 0 : index
    %c0_7 = arith.constant 0 : index
    %9 = vector.load %arg4[%c0_6, %c0_7] : memref<20x20xbf16, #tpu.memory_space<vmem>>, vector<20x20xbf16>
    %cst_8 = arith.constant dense<0.000000e+00> : vector<8x20xf32>
    %10 = tpu.matmul %8, %9, %cst_8 {dimension_numbers = #tpu.dot_dimension_numbers<[1], [0], [0], [1], [0, 0, 1, 1], [], []>} : vector<8x20xbf16>, vector<20x20xbf16>, vector<8x20xf32> -> vector<8x20xf32>
    %c0_9 = arith.constant 0 : index
    %c0_10 = arith.constant 0 : index
    %11 = vector.load %arg5[%c0_9, %c0_10] : memref<1x20xf32, #tpu.memory_space<vmem>>, vector<1x20xf32>
    %12 = vector.broadcast %11 : vector<1x20xf32> to vector<8x20xf32>
    %13 = arith.addf %10, %12 : vector<8x20xf32>
    %cst_11 = arith.constant 0.000000e+00 : f32
    %14 = vector.broadcast %cst_11 : f32 to vector<8x20xf32>
    %15 = arith.maximumf %13, %14 : vector<8x20xf32>
    %16 = arith.truncf %15 : vector<8x20xf32> to vector<8x20xbf16>
    %c0_12 = arith.constant 0 : index
    %c0_13 = arith.constant 0 : index
    %17 = vector.load %arg6[%c0_12, %c0_13] : memref<20x20xbf16, #tpu.memory_space<vmem>>, vector<20x20xbf16>
    %cst_14 = arith.constant dense<0.000000e+00> : vector<8x20xf32>
    %18 = tpu.matmul %16, %17, %cst_14 {dimension_numbers = #tpu.dot_dimension_numbers<[1], [0], [0], [1], [0, 0, 1, 1], [], []>} : vector<8x20xbf16>, vector<20x20xbf16>, vector<8x20xf32> -> vector<8x20xf32>
    %c0_15 = arith.constant 0 : index
    %c0_16 = arith.constant 0 : index
    %19 = vector.load %arg7[%c0_15, %c0_16] : memref<1x20xf32, #tpu.memory_space<vmem>>, vector<1x20xf32>
    %20 = vector.broadcast %19 : vector<1x20xf32> to vector<8x20xf32>
    %21 = arith.addf %18, %20 : vector<8x20xf32>
    %cst_17 = arith.constant 0.000000e+00 : f32
    %22 = vector.broadcast %cst_17 : f32 to vector<8x20xf32>
    %23 = arith.maximumf %21, %22 : vector<8x20xf32>
    %24 = arith.truncf %23 : vector<8x20xf32> to vector<8x20xbf16>
    %c0_18 = arith.constant 0 : index
    %c0_19 = arith.constant 0 : index
    %25 = vector.load %arg8[%c0_18, %c0_19] : memref<20x128xbf16, #tpu.memory_space<vmem>>, vector<20x128xbf16>
    %cst_20 = arith.constant dense<0.000000e+00> : vector<8x128xf32>
    %26 = tpu.matmul %24, %25, %cst_20 {dimension_numbers = #tpu.dot_dimension_numbers<[1], [0], [0], [1], [0, 0, 1, 1], [], []>} : vector<8x20xbf16>, vector<20x128xbf16>, vector<8x128xf32> -> vector<8x128xf32>
    %c0_21 = arith.constant 0 : index
    %c0_22 = arith.constant 0 : index
    %27 = vector.load %arg9[%c0_21, %c0_22] : memref<1x128xf32, #tpu.memory_space<vmem>>, vector<1x128xf32>
    %28 = vector.broadcast %27 : vector<1x128xf32> to vector<8x128xf32>
    %29 = arith.addf %26, %28 : vector<8x128xf32>
    %c0_23 = arith.constant 0 : index
    %c0_24 = arith.constant 0 : index
    %30 = vector.load %arg10[%c0_23, %c0_24] : memref<8x128xf32, #tpu.memory_space<vmem>>, vector<8x128xf32>
    tpu.vector_store %arg10[%c0_23, %c0_24], %29 {strides = array<i32>} : memref<8x128xf32, #tpu.memory_space<vmem>>, vector<8x128xf32>,
    return
  }
  func.func @transform_0(%arg0: i32) -> (i32, i32) {
    %c0_i32 = arith.constant 0 : i32
    %c0_i32_0 = arith.constant 0 : i32
    %c0_i32_1 = arith.constant 0 : i32
    return %c0_i32, %c0_i32_0 : i32, i32
  }
  func.func @transform_1(%arg0: i32) -> (i32, i32) {
    %c0_i32 = arith.constant 0 : i32
    %c0_i32_0 = arith.constant 0 : i32
    %c0_i32_1 = arith.constant 0 : i32
    return %c0_i32, %c0_i32_0 : i32, i32
  }
  func.func @transform_2(%arg0: i32) -> (i32, i32) {
    %c0_i32 = arith.constant 0 : i32
    %c0_i32_0 = arith.constant 0 : i32
    %c0_i32_1 = arith.constant 0 : i32
    return %c0_i32, %c0_i32_0 : i32, i32
  }
  func.func @transform_3(%arg0: i32) -> (i32, i32) {
    %c0_i32 = arith.constant 0 : i32
    %c0_i32_0 = arith.constant 0 : i32
    %c0_i32_1 = arith.constant 0 : i32
    return %c0_i32, %c0_i32_0 : i32, i32
  }
  func.func @transform_4(%arg0: i32) -> (i32, i32) {
    %c0_i32 = arith.constant 0 : i32
    %c0_i32_0 = arith.constant 0 : i32
    %c0_i32_1 = arith.constant 0 : i32
    return %c0_i32, %c0_i32_0 : i32, i32
  }
  func.func @transform_5(%arg0: i32) -> (i32, i32) {
    %c0_i32 = arith.constant 0 : i32
    %c0_i32_0 = arith.constant 0 : i32
    %c0_i32_1 = arith.constant 0 : i32
    return %c0_i32, %c0_i32_0 : i32, i32
  }
  func.func @transform_6(%arg0: i32) -> (i32, i32) {
    %c0_i32 = arith.constant 0 : i32
    %c0_i32_0 = arith.constant 0 : i32
    %c0_i32_1 = arith.constant 0 : i32
    return %c0_i32, %c0_i32_0 : i32, i32
  }
  func.func @transform_7(%arg0: i32) -> (i32, i32) {
    %c0_i32 = arith.constant 0 : i32
    %c0_i32_0 = arith.constant 0 : i32
    %c0_i32_1 = arith.constant 0 : i32
    return %c0_i32, %c0_i32_0 : i32, i32
  }
  func.func @transform_8(%arg0: i32) -> (i32, i32) {
    %c0_i32 = arith.constant 0 : i32
    %c0_i32_0 = arith.constant 0 : i32
    %c0_i32_1 = arith.constant 0 : i32
    return %c0_i32, %c0_i32_0 : i32, i32
  }
  func.func @transform_9(%arg0: i32) -> (i32, i32) {
    %c0_i32 = arith.constant 0 : i32
    %c0_i32_0 = arith.constant 0 : i32
    %c0_i32_1 = arith.constant 0 : i32
    return %c0_i32, %c0_i32_0 : i32, i32
  }
}

</mosaic_0001>

<llo_original>
// kernel: tiny_mlp_forward.1
$region0: #{tiny_mlp_forward.1}
  #allocation0 [shape = 'u32[]', space=smem, size = 0x4, offset = 0x4, fixed_abs, tag = 'smem constant byte address 0x4 - core index']
  #allocation1 [shape = 'u32[144,128]{1,0:T(1,128)}', space=vmem, size = 0x12000, scoped, tag = 'internal scratch']
  %s0 = inlined_call_operand.vmem [shape: bf16[8,1024], index: 0, kind: input, shape index: {}]
  %s1 = inlined_call_operand.vmem [shape: bf16[1024,20], index: 1, kind: input, shape index: {}]
  %s2 = inlined_call_operand.vmem [shape: f32[1,20], index: 2, kind: input, shape index: {}]
  %s3 = inlined_call_operand.vmem [shape: bf16[20,20], index: 3, kind: input, shape index: {}]
  %s4 = inlined_call_operand.vmem [shape: f32[1,20], index: 4, kind: input, shape index: {}]
  %s5 = inlined_call_operand.vmem [shape: bf16[20,20], index: 5, kind: input, shape index: {}]
  %s6 = inlined_call_operand.vmem [shape: f32[1,20], index: 6, kind: input, shape index: {}]
  %s7 = inlined_call_operand.vmem [shape: bf16[20,128], index: 7, kind: input, shape index: {}]
  %s8 = inlined_call_operand.vmem [shape: f32[1,128], index: 8, kind: input, shape index: {}]
  %s9 = inlined_call_operand.vmem [shape: f32[8,128], index: 9, kind: output, shape index: {}]
  %s10 = sld [smem:[#allocation0]]
  $region46: #{tiny_mlp_forward.1} parent=0
    _
  %s12 = ssub.s32 1, %s10
  %s13 = scalar_select 0, %s12, %s10
  // Predicated region
  $region2: #{tiny_mlp_forward.1} parent=0 // pred_check
    _
  $region3: #{tiny_mlp_forward.1} parent=0 // pred_check_branch
    %15 = sbr.rel (0) target = $region5
  $region4: #{tiny_mlp_forward.1} parent=0 // pred_region
    _
  $region5: #{tiny_mlp_forward.1} parent=0 // pred_fallthru
    _
  // Predicated region
  $region6: #{tiny_mlp_forward.1} parent=0 // pred_check
    _
  $region7: #{tiny_mlp_forward.1} parent=0 // pred_check_branch
    %17 = sbr.rel (0) target = $region9
  $region8: #{tiny_mlp_forward.1} parent=0 // pred_region
    _
  $region9: #{tiny_mlp_forward.1} parent=0 // pred_fallthru
    _
  // Predicated region
  $region10: #{tiny_mlp_forward.1} parent=0 // pred_check
    _
  $region11: #{tiny_mlp_forward.1} parent=0 // pred_check_branch
    %19 = sbr.rel (0) target = $region13
  $region12: #{tiny_mlp_forward.1} parent=0 // pred_region
    _
  $region13: #{tiny_mlp_forward.1} parent=0 // pred_fallthru
    _
  // Predicated region
  $region14: #{tiny_mlp_forward.1} parent=0 // pred_check
    _
  $region15: #{tiny_mlp_forward.1} parent=0 // pred_check_branch
    %21 = sbr.rel (0) target = $region17
  $region16: #{tiny_mlp_forward.1} parent=0 // pred_region
    _
  $region17: #{tiny_mlp_forward.1} parent=0 // pred_fallthru
    _
  // Predicated region
  $region18: #{tiny_mlp_forward.1} parent=0 // pred_check
    _
  $region19: #{tiny_mlp_forward.1} parent=0 // pred_check_branch
    %23 = sbr.rel (0) target = $region21
  $region20: #{tiny_mlp_forward.1} parent=0 // pred_region
    _
  $region21: #{tiny_mlp_forward.1} parent=0 // pred_fallthru
    _
  // Predicated region
  $region22: #{tiny_mlp_forward.1} parent=0 // pred_check
    _
  $region23: #{tiny_mlp_forward.1} parent=0 // pred_check_branch
    %25 = sbr.rel (0) target = $region25
  $region24: #{tiny_mlp_forward.1} parent=0 // pred_region
    _
  $region25: #{tiny_mlp_forward.1} parent=0 // pred_fallthru
    _
  // Predicated region
  $region26: #{tiny_mlp_forward.1} parent=0 // pred_check
    _
  $region27: #{tiny_mlp_forward.1} parent=0 // pred_check_branch
    %27 = sbr.rel (0) target = $region29
  $region28: #{tiny_mlp_forward.1} parent=0 // pred_region
    _
  $region29: #{tiny_mlp_forward.1} parent=0 // pred_fallthru
    _
  // Predicated region
  $region30: #{tiny_mlp_forward.1} parent=0 // pred_check
    _
  $region31: #{tiny_mlp_forward.1} parent=0 // pred_check_branch
    %29 = sbr.rel (0) target = $region33
  $region32: #{tiny_mlp_forward.1} parent=0 // pred_region
    _
  $region33: #{tiny_mlp_forward.1} parent=0 // pred_fallthru
    _
  // Predicated region
  $region34: #{tiny_mlp_forward.1} parent=0 // pred_check
    _
  $region35: #{tiny_mlp_forward.1} parent=0 // pred_check_branch
    %31 = sbr.rel (0) target = $region37
  $region36: #{tiny_mlp_forward.1} parent=0 // pred_region
    _
  $region37: #{tiny_mlp_forward.1} parent=0 // pred_fallthru
    _
  %v33 = vld [vmem:[%s0] sm:$0xff]
  %v34 = vld [vmem:[%s0 + $0x8] sm:$0xff]
  %v35 = vld [vmem:[%s0 + $0x10] sm:$0xff]
  %v36 = vld [vmem:[%s0 + $0x18] sm:$0xff]
  %v37 = vld [vmem:[%s1] sm:$0xf]
  %v38 = vld [vmem:[%s1 + $0x4] sm:$0xf]
  %v39 = vld [vmem:[%s1 + $0x8] sm:$0xf]
  %v40 = vld [vmem:[%s1 + $0xc] sm:$0xf]
  %v41 = vld [vmem:[%s1 + $0x10] sm:$0xf]
  %v42 = vld [vmem:[%s1 + $0x14] sm:$0xf]
  %v43 = vld [vmem:[%s1 + $0x18] sm:$0xf]
  %v44 = vld [vmem:[%s1 + $0x1c] sm:$0xf]
  %v45 = vld [vmem:[%s1 + $0x20] sm:$0xf]
  %v46 = vld [vmem:[%s1 + $0x24] sm:$0xf]
  %v47 = vld [vmem:[%s1 + $0x28] sm:$0xf]
  %v48 = vld [vmem:[%s1 + $0x2c] sm:$0xf]
  %v49 = vld [vmem:[%s1 + $0x30] sm:$0xf]
  %v50 = vld [vmem:[%s1 + $0x34] sm:$0xf]
  %v51 = vld [vmem:[%s1 + $0x38] sm:$0xf]
  %v52 = vld [vmem:[%s1 + $0x3c] sm:$0xf]
  %v53 = vld [vmem:[%s1 + $0x40] sm:$0xf]
  %v54 = vld [vmem:[%s1 + $0x44] sm:$0xf]
  %v55 = vld [vmem:[%s1 + $0x48] sm:$0xf]
  %v56 = vld [vmem:[%s1 + $0x4c] sm:$0xf]
  %v57 = vld [vmem:[%s1 + $0x50] sm:$0xf]
  %v58 = vld [vmem:[%s1 + $0x54] sm:$0xf]
  %v59 = vld [vmem:[%s1 + $0x58] sm:$0xf]
  %v60 = vld [vmem:[%s1 + $0x5c] sm:$0xf]
  %v61 = vld [vmem:[%s1 + $0x60] sm:$0xf]
  %v62 = vld [vmem:[%s1 + $0x64] sm:$0xf]
  %v63 = vld [vmem:[%s1 + $0x68] sm:$0xf]
  %v64 = vld [vmem:[%s1 + $0x6c] sm:$0xf]
  %v65 = vld [vmem:[%s1 + $0x70] sm:$0xf]
  %v66 = vld [vmem:[%s1 + $0x74] sm:$0xf]
  %v67 = vld [vmem:[%s1 + $0x78] sm:$0xf]
  %v68 = vld [vmem:[%s1 + $0x7c] sm:$0xf]
  %v69 = vld [vmem:[%s1 + $0x80] sm:$0xf]
  %v70 = vld [vmem:[%s1 + $0x84] sm:$0xf]
  %v71 = vld [vmem:[%s1 + $0x88] sm:$0xf]
  %v72 = vld [vmem:[%s1 + $0x8c] sm:$0xf]
  %v73 = vld [vmem:[%s1 + $0x90] sm:$0xf]
  %v74 = vld [vmem:[%s1 + $0x94] sm:$0xf]
  %v75 = vld [vmem:[%s1 + $0x98] sm:$0xf]
  %v76 = vld [vmem:[%s1 + $0x9c] sm:$0xf]
  %v77 = vld [vmem:[%s1 + $0xa0] sm:$0xf]
  %v78 = vld [vmem:[%s1 + $0xa4] sm:$0xf]
  %v79 = vld [vmem:[%s1 + $0xa8] sm:$0xf]
  %v80 = vld [vmem:[%s1 + $0xac] sm:$0xf]
  %v81 = vld [vmem:[%s1 + $0xb0] sm:$0xf]
  %v82 = vld [vmem:[%s1 + $0xb4] sm:$0xf]
  %v83 = vld [vmem:[%s1 + $0xb8] sm:$0xf]
  %v84 = vld [vmem:[%s1 + $0xbc] sm:$0xf]
  %v85 = vld [vmem:[%s1 + $0xc0] sm:$0xf]
  %v86 = vld [vmem:[%s1 + $0xc4] sm:$0xf]
  %v87 = vld [vmem:[%s1 + $0xc8] sm:$0xf]
  %v88 = vld [vmem:[%s1 + $0xcc] sm:$0xf]
  %v89 = vld [vmem:[%s1 + $0xd0] sm:$0xf]
  %v90 = vld [vmem:[%s1 + $0xd4] sm:$0xf]
  %v91 = vld [vmem:[%s1 + $0xd8] sm:$0xf]
  %v92 = vld [vmem:[%s1 + $0xdc] sm:$0xf]
  %v93 = vld [vmem:[%s1 + $0xe0] sm:$0xf]
  %v94 = vld [vmem:[%s1 + $0xe4] sm:$0xf]
  %v95 = vld [vmem:[%s1 + $0xe8] sm:$0xf]
  %v96 = vld [vmem:[%s1 + $0xec] sm:$0xf]
  %v97 = vld [vmem:[%s1 + $0xf0] sm:$0xf]
  %v98 = vld [vmem:[%s1 + $0xf4] sm:$0xf]
  %v99 = vld [vmem:[%s1 + $0xf8] sm:$0xf]
  %v100 = vld [vmem:[%s1 + $0xfc] sm:$0xf]
  %v101 = vld [vmem:[%s1 + $0x100] sm:$0xf]
  %v102 = vld [vmem:[%s1 + $0x104] sm:$0xf]
  %v103 = vld [vmem:[%s1 + $0x108] sm:$0xf]
  %v104 = vld [vmem:[%s1 + $0x10c] sm:$0xf]
  %v105 = vld [vmem:[%s1 + $0x110] sm:$0xf]
  %v106 = vld [vmem:[%s1 + $0x114] sm:$0xf]
  %v107 = vld [vmem:[%s1 + $0x118] sm:$0xf]
  %v108 = vld [vmem:[%s1 + $0x11c] sm:$0xf]
  %v109 = vld [vmem:[%s1 + $0x120] sm:$0xf]
  %v110 = vld [vmem:[%s1 + $0x124] sm:$0xf]
  %v111 = vld [vmem:[%s1 + $0x128] sm:$0xf]
  %v112 = vld [vmem:[%s1 + $0x12c] sm:$0xf]
  %v113 = vld [vmem:[%s1 + $0x130] sm:$0xf]
  %v114 = vld [vmem:[%s1 + $0x134] sm:$0xf]
  %v115 = vld [vmem:[%s1 + $0x138] sm:$0xf]
  %v116 = vld [vmem:[%s1 + $0x13c] sm:$0xf]
  %v117 = vld [vmem:[%s1 + $0x140] sm:$0xf]
  %v118 = vld [vmem:[%s1 + $0x144] sm:$0xf]
  %v119 = vld [vmem:[%s1 + $0x148] sm:$0xf]
  %v120 = vld [vmem:[%s1 + $0x14c] sm:$0xf]
  %v121 = vld [vmem:[%s1 + $0x150] sm:$0xf]
  %v122 = vld [vmem:[%s1 + $0x154] sm:$0xf]
  %v123 = vld [vmem:[%s1 + $0x158] sm:$0xf]
  %v124 = vld [vmem:[%s1 + $0x15c] sm:$0xf]
  %v125 = vld [vmem:[%s1 + $0x160] sm:$0xf]
  %v126 = vld [vmem:[%s1 + $0x164] sm:$0xf]
  %v127 = vld [vmem:[%s1 + $0x168] sm:$0xf]
  %v128 = vld [vmem:[%s1 + $0x16c] sm:$0xf]
  %v129 = vld [vmem:[%s1 + $0x170] sm:$0xf]
  %v130 = vld [vmem:[%s1 + $0x174] sm:$0xf]
  %v131 = vld [vmem:[%s1 + $0x178] sm:$0xf]
  %v132 = vld [vmem:[%s1 + $0x17c] sm:$0xf]
  %v133 = vld [vmem:[%s1 + $0x180] sm:$0xf]
  %v134 = vld [vmem:[%s1 + $0x184] sm:$0xf]
  %v135 = vld [vmem:[%s1 + $0x188] sm:$0xf]
  %v136 = vld [vmem:[%s1 + $0x18c] sm:$0xf]
  %v137 = vld [vmem:[%s1 + $0x190] sm:$0xf]
  %v138 = vld [vmem:[%s1 + $0x194] sm:$0xf]
  %v139 = vld [vmem:[%s1 + $0x198] sm:$0xf]
  %v140 = vld [vmem:[%s1 + $0x19c] sm:$0xf]
  %v141 = vld [vmem:[%s1 + $0x1a0] sm:$0xf]
  %v142 = vld [vmem:[%s1 + $0x1a4] sm:$0xf]
  %v143 = vld [vmem:[%s1 + $0x1a8] sm:$0xf]
  %v144 = vld [vmem:[%s1 + $0x1ac] sm:$0xf]
  %v145 = vld [vmem:[%s1 + $0x1b0] sm:$0xf]
  %v146 = vld [vmem:[%s1 + $0x1b4] sm:$0xf]
  %v147 = vld [vmem:[%s1 + $0x1b8] sm:$0xf]
  %v148 = vld [vmem:[%s1 + $0x1bc] sm:$0xf]
  %v149 = vld [vmem:[%s1 + $0x1c0] sm:$0xf]
  %v150 = vld [vmem:[%s1 + $0x1c4] sm:$0xf]
  %v151 = vld [vmem:[%s1 + $0x1c8] sm:$0xf]
  %v152 = vld [vmem:[%s1 + $0x1cc] sm:$0xf]
  %v153 = vld [vmem:[%s1 + $0x1d0] sm:$0xf]
  %v154 = vld [vmem:[%s1 + $0x1d4] sm:$0xf]
  %v155 = vld [vmem:[%s1 + $0x1d8] sm:$0xf]
  %v156 = vld [vmem:[%s1 + $0x1dc] sm:$0xf]
  %v157 = vld [vmem:[%s1 + $0x1e0] sm:$0xf]
  %v158 = vld [vmem:[%s1 + $0x1e4] sm:$0xf]
  %v159 = vld [vmem:[%s1 + $0x1e8] sm:$0xf]
  %v160 = vld [vmem:[%s1 + $0x1ec] sm:$0xf]
  %v161 = vld [vmem:[%s1 + $0x1f0] sm:$0xf]
  %v162 = vld [vmem:[%s1 + $0x1f4] sm:$0xf]
  %v163 = vld [vmem:[%s1 + $0x1f8] sm:$0xf]
  %v164 = vld [vmem:[%s1 + $0x1fc] sm:$0xf]
  %v165 = vld [vmem:[%s2] sm:$0x1]
  %v167 = vlaneseq
  %v168 = vshrl.u32 %v167, 7
  %v169 = vsub.s32 0, %v168
  %v170 = vrot.slane %v165, %v169
  %v176 = vunpack.c.l.b16 %v33
  %v177 = vunpack.c.h.b16 %v33
  %v178 = vunpack.c.l.b16 %v34
  %v179 = vunpack.c.h.b16 %v34
  %v180 = vunpack.c.l.b16 %v35
  %v181 = vunpack.c.h.b16 %v35
  %v182 = vunpack.c.l.b16 %v36
  %v183 = vunpack.c.h.b16 %v36
  %v184 = vpack.c.b16 %v176, %v176
  %v185 = vpack.c.b16 %v177, %v177
  %v186 = vpack.c.b16 %v178, %v178
  %v187 = vpack.c.b16 %v179, %v179
  %v188 = vpack.c.b16 %v180, %v180
  %v189 = vpack.c.b16 %v181, %v181
  %v190 = vpack.c.b16 %v182, %v182
  %v191 = vpack.c.b16 %v183, %v183
  %v328 = vunpack.c.l.b16 %v37
  %v329 = vunpack.c.l.b16 %v38
  %v330 = vunpack.c.l.b16 %v39
  %v331 = vunpack.c.l.b16 %v40
  %v332 = vunpack.c.l.b16 %v41
  %v333 = vunpack.c.l.b16 %v42
  %v334 = vunpack.c.l.b16 %v43
  %v335 = vunpack.c.l.b16 %v44
  %v336 = vunpack.c.l.b16 %v45
  %v337 = vunpack.c.l.b16 %v46
  %v338 = vunpack.c.l.b16 %v47
  %v339 = vunpack.c.l.b16 %v48
  %v340 = vunpack.c.l.b16 %v49
  %v341 = vunpack.c.l.b16 %v50
  %v342 = vunpack.c.l.b16 %v51
  %v343 = vunpack.c.l.b16 %v52
  %v344 = vunpack.c.l.b16 %v53
  %v345 = vunpack.c.l.b16 %v54
  %v346 = vunpack.c.l.b16 %v55
  %v347 = vunpack.c.l.b16 %v56
  %v348 = vunpack.c.l.b16 %v57
  %v349 = vunpack.c.l.b16 %v58
  %v350 = vunpack.c.l.b16 %v59
  %v351 = vunpack.c.l.b16 %v60
  %v352 = vunpack.c.l.b16 %v61
  %v353 = vunpack.c.l.b16 %v62
  %v354 = vunpack.c.l.b16 %v63
  %v355 = vunpack.c.l.b16 %v64
  %v356 = vunpack.c.l.b16 %v65
  %v357 = vunpack.c.l.b16 %v66
  %v358 = vunpack.c.l.b16 %v67
  %v359 = vunpack.c.l.b16 %v68
  %v360 = vunpack.c.l.b16 %v69
  %v361 = vunpack.c.l.b16 %v70
  %v362 = vunpack.c.l.b16 %v71
  %v363 = vunpack.c.l.b16 %v72
  %v364 = vunpack.c.l.b16 %v73
  %v365 = vunpack.c.l.b16 %v74
  %v366 = vunpack.c.l.b16 %v75
  %v367 = vunpack.c.l.b16 %v76
  %v368 = vunpack.c.l.b16 %v77
  %v369 = vunpack.c.l.b16 %v78
  %v370 = vunpack.c.l.b16 %v79
  %v371 = vunpack.c.l.b16 %v80
  %v372 = vunpack.c.l.b16 %v81
  %v373 = vunpack.c.l.b16 %v82
  %v374 = vunpack.c.l.b16 %v83
  %v375 = vunpack.c.l.b16 %v84
  %v376 = vunpack.c.l.b16 %v85
  %v377 = vunpack.c.l.b16 %v86
  %v378 = vunpack.c.l.b16 %v87
  %v379 = vunpack.c.l.b16 %v88
  %v380 = vunpack.c.l.b16 %v89
  %v381 = vunpack.c.l.b16 %v90
  %v382 = vunpack.c.l.b16 %v91
  %v383 = vunpack.c.l.b16 %v92
  %v384 = vunpack.c.l.b16 %v93
  %v385 = vunpack.c.l.b16 %v94
  %v386 = vunpack.c.l.b16 %v95
  %v387 = vunpack.c.l.b16 %v96
  %v388 = vunpack.c.l.b16 %v97
  %v389 = vunpack.c.l.b16 %v98
  %v390 = vunpack.c.l.b16 %v99
  %v391 = vunpack.c.l.b16 %v100
  %v392 = vunpack.c.l.b16 %v101
  %v393 = vunpack.c.l.b16 %v102
  %v394 = vunpack.c.l.b16 %v103
  %v395 = vunpack.c.l.b16 %v104
  %v396 = vunpack.c.l.b16 %v105
  %v397 = vunpack.c.l.b16 %v106
  %v398 = vunpack.c.l.b16 %v107
  %v399 = vunpack.c.l.b16 %v108
  %v400 = vunpack.c.l.b16 %v109
  %v401 = vunpack.c.l.b16 %v110
  %v402 = vunpack.c.l.b16 %v111
  %v403 = vunpack.c.l.b16 %v112
  %v404 = vunpack.c.l.b16 %v113
  %v405 = vunpack.c.l.b16 %v114
  %v406 = vunpack.c.l.b16 %v115
  %v407 = vunpack.c.l.b16 %v116
  %v408 = vunpack.c.l.b16 %v117
  %v409 = vunpack.c.l.b16 %v118
  %v410 = vunpack.c.l.b16 %v119
  %v411 = vunpack.c.l.b16 %v120
  %v412 = vunpack.c.l.b16 %v121
  %v413 = vunpack.c.l.b16 %v122
  %v414 = vunpack.c.l.b16 %v123
  %v415 = vunpack.c.l.b16 %v124
  %v416 = vunpack.c.l.b16 %v125
  %v417 = vunpack.c.l.b16 %v126
  %v418 = vunpack.c.l.b16 %v127
  %v419 = vunpack.c.l.b16 %v128
  %v420 = vunpack.c.l.b16 %v129
  %v421 = vunpack.c.l.b16 %v130
  %v422 = vunpack.c.l.b16 %v131
  %v423 = vunpack.c.l.b16 %v132
  %v424 = vunpack.c.l.b16 %v133
  %v425 = vunpack.c.l.b16 %v134
  %v426 = vunpack.c.l.b16 %v135
  %v427 = vunpack.c.l.b16 %v136
  %v428 = vunpack.c.l.b16 %v137
  %v429 = vunpack.c.l.b16 %v138
  %v430 = vunpack.c.l.b16 %v139
  %v431 = vunpack.c.l.b16 %v140
  %v432 = vunpack.c.l.b16 %v141
  %v433 = vunpack.c.l.b16 %v142
  %v434 = vunpack.c.l.b16 %v143
  %v435 = vunpack.c.l.b16 %v144
  %v436 = vunpack.c.l.b16 %v145
  %v437 = vunpack.c.l.b16 %v146
  %v438 = vunpack.c.l.b16 %v147
  %v439 = vunpack.c.l.b16 %v148
  %v440 = vunpack.c.l.b16 %v149
  %v441 = vunpack.c.l.b16 %v150
  %v442 = vunpack.c.l.b16 %v151
  %v443 = vunpack.c.l.b16 %v152
  %v444 = vunpack.c.l.b16 %v153
  %v445 = vunpack.c.l.b16 %v154
  %v446 = vunpack.c.l.b16 %v155
  %v447 = vunpack.c.l.b16 %v156
  %v448 = vunpack.c.l.b16 %v157
  %v449 = vunpack.c.l.b16 %v158
  %v450 = vunpack.c.l.b16 %v159
  %v451 = vunpack.c.l.b16 %v160
  %v452 = vunpack.c.l.b16 %v161
  %v453 = vunpack.c.l.b16 %v162
  %v454 = vunpack.c.l.b16 %v163
  %v455 = vunpack.c.l.b16 %v164
  %v456 = vpack.c.b16 %v329, %v328
  %v457 = vpack.c.b16 %v331, %v330
  %v458 = vpack.c.b16 %v333, %v332
  %v459 = vpack.c.b16 %v335, %v334
  %v460 = vpack.c.b16 %v337, %v336
  %v461 = vpack.c.b16 %v339, %v338
  %v462 = vpack.c.b16 %v341, %v340
  %v463 = vpack.c.b16 %v343, %v342
  %v464 = vpack.c.b16 %v345, %v344
  %v465 = vpack.c.b16 %v347, %v346
  %v466 = vpack.c.b16 %v349, %v348
  %v467 = vpack.c.b16 %v351, %v350
  %v468 = vpack.c.b16 %v353, %v352
  %v469 = vpack.c.b16 %v355, %v354
  %v470 = vpack.c.b16 %v357, %v356
  %v471 = vpack.c.b16 %v359, %v358
  %v472 = vpack.c.b16 %v361, %v360
  %v473 = vpack.c.b16 %v363, %v362
  %v474 = vpack.c.b16 %v365, %v364
  %v475 = vpack.c.b16 %v367, %v366
  %v476 = vpack.c.b16 %v369, %v368
  %v477 = vpack.c.b16 %v371, %v370
  %v478 = vpack.c.b16 %v373, %v372
  %v479 = vpack.c.b16 %v375, %v374
  %v480 = vpack.c.b16 %v377, %v376
  %v481 = vpack.c.b16 %v379, %v378
  %v482 = vpack.c.b16 %v381, %v380
  %v483 = vpack.c.b16 %v383, %v382
  %v484 = vpack.c.b16 %v385, %v384
  %v485 = vpack.c.b16 %v387, %v386
  %v486 = vpack.c.b16 %v389, %v388
  %v487 = vpack.c.b16 %v391, %v390
  %v488 = vpack.c.b16 %v393, %v392
  %v489 = vpack.c.b16 %v395, %v394
  %v490 = vpack.c.b16 %v397, %v396
  %v491 = vpack.c.b16 %v399, %v398
  %v492 = vpack.c.b16 %v401, %v400
  %v493 = vpack.c.b16 %v403, %v402
  %v494 = vpack.c.b16 %v405, %v404
  %v495 = vpack.c.b16 %v407, %v406
  %v496 = vpack.c.b16 %v409, %v408
  %v497 = vpack.c.b16 %v411, %v410
  %v498 = vpack.c.b16 %v413, %v412
  %v499 = vpack.c.b16 %v415, %v414
  %v500 = vpack.c.b16 %v417, %v416
  %v501 = vpack.c.b16 %v419, %v418
  %v502 = vpack.c.b16 %v421, %v420
  %v503 = vpack.c.b16 %v423, %v422
  %v504 = vpack.c.b16 %v425, %v424
  %v505 = vpack.c.b16 %v427, %v426
  %v506 = vpack.c.b16 %v429, %v428
  %v507 = vpack.c.b16 %v431, %v430
  %v508 = vpack.c.b16 %v433, %v432
  %v509 = vpack.c.b16 %v435, %v434
  %v510 = vpack.c.b16 %v437, %v436
  %v511 = vpack.c.b16 %v439, %v438
  %v512 = vpack.c.b16 %v441, %v440
  %v513 = vpack.c.b16 %v443, %v442
  %v514 = vpack.c.b16 %v445, %v444
  %v515 = vpack.c.b16 %v447, %v446
  %v516 = vpack.c.b16 %v449, %v448
  %v517 = vpack.c.b16 %v451, %v450
  %v518 = vpack.c.b16 %v453, %v452
  %v519 = vpack.c.b16 %v455, %v454
  %584 = vmatprep.subr.bf16.mxu0 0
  %585 = vmatpush1.bf16.msra.mxu0 %v456
  %586 = vmatprep.subr.bf16.mxu0 0
  %587 = vmatpush1.bf16.msra.mxu0 %v457
  %588 = vmatprep.subr.bf16.mxu0 0
  %589 = vmatpush1.bf16.msra.mxu0 %v458
  %590 = vmatprep.subr.bf16.mxu0 0
  %591 = vmatpush1.bf16.msra.mxu0 %v459
  %592 = vmatprep.subr.bf16.mxu0 0
  %593 = vmatpush1.bf16.msra.mxu0 %v460
  %594 = vmatprep.subr.bf16.mxu0 0
  %595 = vmatpush1.bf16.msra.mxu0 %v461
  %596 = vmatprep.subr.bf16.mxu0 0
  %597 = vmatpush1.bf16.msra.mxu0 %v462
  %598 = vmatprep.subr.bf16.mxu0 0
  %599 = vmatpush1.bf16.msra.mxu0 %v463
  %600 = vmatprep.subr.bf16.mxu0 0
  %601 = vmatpush1.bf16.msra.mxu0 %v464
  %602 = vmatprep.subr.bf16.mxu0 0
  %603 = vmatpush1.bf16.msra.mxu0 %v465
  %604 = vmatprep.subr.bf16.mxu0 0
  %605 = vmatpush1.bf16.msra.mxu0 %v466
  %606 = vmatprep.subr.bf16.mxu0 0
  %607 = vmatpush1.bf16.msra.mxu0 %v467
  %608 = vmatprep.subr.bf16.mxu0 0
  %609 = vmatpush1.bf16.msra.mxu0 %v468
  %610 = vmatprep.subr.bf16.mxu0 0
  %611 = vmatpush1.bf16.msra.mxu0 %v469
  %612 = vmatprep.subr.bf16.mxu0 0
  %613 = vmatpush1.bf16.msra.mxu0 %v470
  %614 = vmatprep.subr.bf16.mxu0 0
  %615 = vmatpush1.bf16.msra.mxu0 %v471
  %616 = vmatprep.mubr.bf16.mxu0 %v185
  %617 = vmatmul.mubr.bf16.gmra.mrb[0].mxu0 %v184
  %v618 = vpop.f32.mrb[0].mxu0
  %v619 = vadd.f32 %v170, %v618
  %v620 = vpop.f32.mrb[0].mxu0
  %v621 = vpop.f32.mrb[0].mxu0
  %v622 = vpop.f32.mrb[0].mxu0
  %623 = vdwg.mxu0
  %624 = vmatprep.subr.bf16.mxu0 0
  %625 = vmatpush1.bf16.msra.mxu0 %v472
  %626 = vmatprep.subr.bf16.mxu0 0
  %627 = vmatpush1.bf16.msra.mxu0 %v473
  %628 = vmatprep.subr.bf16.mxu0 0
  %629 = vmatpush1.bf16.msra.mxu0 %v474
  %630 = vmatprep.subr.bf16.mxu0 0
  %631 = vmatpush1.bf16.msra.mxu0 %v475
  %632 = vmatprep.subr.bf16.mxu0 0
  %633 = vmatpush1.bf16.msra.mxu0 %v476
  %634 = vmatprep.subr.bf16.mxu0 0
  %635 = vmatpush1.bf16.msra.mxu0 %v477
  %636 = vmatprep.subr.bf16.mxu0 0
  %637 = vmatpush1.bf16.msra.mxu0 %v478
  %638 = vmatprep.subr.bf16.mxu0 0
  %639 = vmatpush1.bf16.msra.mxu0 %v479
  %640 = vmatprep.subr.bf16.mxu0 0
  %641 = vmatpush1.bf16.msra.mxu0 %v480
  %642 = vmatprep.subr.bf16.mxu0 0
  %643 = vmatpush1.bf16.msra.mxu0 %v481
  %644 = vmatprep.subr.bf16.mxu0 0
  %645 = vmatpush1.bf16.msra.mxu0 %v482
  %646 = vmatprep.subr.bf16.mxu0 0
  %647 = vmatpush1.bf16.msra.mxu0 %v483
  %648 = vmatprep.subr.bf16.mxu0 0
  %649 = vmatpush1.bf16.msra.mxu0 %v484
  %650 = vmatprep.subr.bf16.mxu0 0
  %651 = vmatpush1.bf16.msra.mxu0 %v485
  %652 = vmatprep.subr.bf16.mxu0 0
  %653 = vmatpush1.bf16.msra.mxu0 %v486
  %654 = vmatprep.subr.bf16.mxu0 0
  %655 = vmatpush1.bf16.msra.mxu0 %v487
  %656 = vmatprep.mubr.bf16.mxu0 %v187
  %657 = vmatmul.mubr.bf16.gmra.mrb[0].mxu0 %v186
  %v658 = vpop.f32.mrb[0].mxu0
  %v659 = vadd.f32 %v619, %v658
  %v660 = vpop.f32.mrb[0].mxu0
  %v661 = vpop.f32.mrb[0].mxu0
  %v662 = vpop.f32.mrb[0].mxu0
  %663 = vdwg.mxu0
  %664 = vmatprep.subr.bf16.mxu0 0
  %665 = vmatpush1.bf16.msra.mxu0 %v488
  %666 = vmatprep.subr.bf16.mxu0 0
  %667 = vmatpush1.bf16.msra.mxu0 %v489
  %668 = vmatprep.subr.bf16.mxu0 0
  %669 = vmatpush1.bf16.msra.mxu0 %v490
  %670 = vmatprep.subr.bf16.mxu0 0
  %671 = vmatpush1.bf16.msra.mxu0 %v491
  %672 = vmatprep.subr.bf16.mxu0 0
  %673 = vmatpush1.bf16.msra.mxu0 %v492
  %674 = vmatprep.subr.bf16.mxu0 0
  %675 = vmatpush1.bf16.msra.mxu0 %v493
  %676 = vmatprep.subr.bf16.mxu0 0
  %677 = vmatpush1.bf16.msra.mxu0 %v494
  %678 = vmatprep.subr.bf16.mxu0 0
  %679 = vmatpush1.bf16.msra.mxu0 %v495
  %680 = vmatprep.subr.bf16.mxu0 0
  %681 = vmatpush1.bf16.msra.mxu0 %v496
  %682 = vmatprep.subr.bf16.mxu0 0
  %683 = vmatpush1.bf16.msra.mxu0 %v497
  %684 = vmatprep.subr.bf16.mxu0 0
  %685 = vmatpush1.bf16.msra.mxu0 %v498
  %686 = vmatprep.subr.bf16.mxu0 0
  %687 = vmatpush1.bf16.msra.mxu0 %v499
  %688 = vmatprep.subr.bf16.mxu0 0
  %689 = vmatpush1.bf16.msra.mxu0 %v500
  %690 = vmatprep.subr.bf16.mxu0 0
  %691 = vmatpush1.bf16.msra.mxu0 %v501
  %692 = vmatprep.subr.bf16.mxu0 0
  %693 = vmatpush1.bf16.msra.mxu0 %v502
  %694 = vmatprep.subr.bf16.mxu0 0
  %695 = vmatpush1.bf16.msra.mxu0 %v503
  %696 = vmatprep.mubr.bf16.mxu0 %v189
  %697 = vmatmul.mubr.bf16.gmra.mrb[0].mxu0 %v188
  %v698 = vpop.f32.mrb[0].mxu0
  %v699 = vadd.f32 %v659, %v698
  %v700 = vpop.f32.mrb[0].mxu0
  %v701 = vpop.f32.mrb[0].mxu0
  %v702 = vpop.f32.mrb[0].mxu0
  %703 = vdwg.mxu0
  %704 = vmatprep.subr.bf16.mxu0 0
  %705 = vmatpush1.bf16.msra.mxu0 %v504
  %706 = vmatprep.subr.bf16.mxu0 0
  %707 = vmatpush1.bf16.msra.mxu0 %v505
  %708 = vmatprep.subr.bf16.mxu0 0
  %709 = vmatpush1.bf16.msra.mxu0 %v506
  %710 = vmatprep.subr.bf16.mxu0 0
  %711 = vmatpush1.bf16.msra.mxu0 %v507
  %712 = vmatprep.subr.bf16.mxu0 0
  %713 = vmatpush1.bf16.msra.mxu0 %v508
  %714 = vmatprep.subr.bf16.mxu0 0
  %715 = vmatpush1.bf16.msra.mxu0 %v509
  %716 = vmatprep.subr.bf16.mxu0 0
  %717 = vmatpush1.bf16.msra.mxu0 %v510
  %718 = vmatprep.subr.bf16.mxu0 0
  %719 = vmatpush1.bf16.msra.mxu0 %v511
  %720 = vmatprep.subr.bf16.mxu0 0
  %721 = vmatpush1.bf16.msra.mxu0 %v512
  %722 = vmatprep.subr.bf16.mxu0 0
  %723 = vmatpush1.bf16.msra.mxu0 %v513
  %724 = vmatprep.subr.bf16.mxu0 0
  %725 = vmatpush1.bf16.msra.mxu0 %v514
  %726 = vmatprep.subr.bf16.mxu0 0
  %727 = vmatpush1.bf16.msra.mxu0 %v515
  %728 = vmatprep.subr.bf16.mxu0 0
  %729 = vmatpush1.bf16.msra.mxu0 %v516
  %730 = vmatprep.subr.bf16.mxu0 0
  %731 = vmatpush1.bf16.msra.mxu0 %v517
  %732 = vmatprep.subr.bf16.mxu0 0
  %733 = vmatpush1.bf16.msra.mxu0 %v518
  %734 = vmatprep.subr.bf16.mxu0 0
  %735 = vmatpush1.bf16.msra.mxu0 %v519
  %736 = vmatprep.mubr.bf16.mxu0 %v191
  %737 = vmatmul.mubr.bf16.gmra.mrb[0].mxu0 %v190
  %v738 = vpop.f32.mrb[0].mxu0
  %v739 = vadd.f32 %v699, %v738
  %v740 = vpop.f32.mrb[0].mxu0
  %v741 = vpop.f32.mrb[0].mxu0
  %v742 = vpop.f32.mrb[0].mxu0
  %743 = vdwg.mxu0
  %v744 = vmax.f32 %v739, 0.0
  %v745 = vpack.c.bf16 %v744, %v744
  %v746 = vld [vmem:[%s3] sm:$0xf]
  %v747 = vld [vmem:[%s3 + $0x4] sm:$0xf]
  %v748 = vld [vmem:[%s3 + $0x8] sm:$0x3]
  %v749 = vld [vmem:[%s4] sm:$0x1]
  %v751 = vlaneseq
  %v752 = vshrl.u32 %v751, 7
  %v753 = vsub.s32 0, %v752
  %v754 = vrot.slane %v749, %v753
  %v759 = vunpack.c.l.b16 %v746
  %v760 = vunpack.c.l.b16 %v747
  %v761 = vunpack.c.l.b16 %v748
  %v762 = vpack.c.b16 %v760, %v759
  %v763 = vpack.c.b16 %v761, %v761
  %vm765 = vcmask 162816
  %v767 = vsel %vm765, %v745, 0
  %vm769 = vcmask 1041408
  %v771 = vsel %vm769, %v763, 0
  %773 = vmatprep.subr.bf16.mxu0 0
  %774 = vmatpush1.bf16.msra.mxu0 %v762
  %775 = vmatprep.subr.bf16.mxu0 0
  %776 = vmatpush1.bf16.msra.mxu0 %v771
  %777 = vmatprep.subr.bf16.mxu0 0
  %778 = vmatpush1.bf16.msra.mxu0 0
  %779 = vmatprep.subr.bf16.mxu0 0
  %780 = vmatpush1.bf16.msra.mxu0 0
  %781 = vmatprep.subr.bf16.mxu0 0
  %782 = vmatpush1.bf16.msra.mxu0 0
  %783 = vmatprep.subr.bf16.mxu0 0
  %784 = vmatpush1.bf16.msra.mxu0 0
  %785 = vmatprep.subr.bf16.mxu0 0
  %786 = vmatpush1.bf16.msra.mxu0 0
  %787 = vmatprep.subr.bf16.mxu0 0
  %788 = vmatpush1.bf16.msra.mxu0 0
  %789 = vmatprep.subr.bf16.mxu0 0
  %790 = vmatpush1.bf16.msra.mxu0 0
  %791 = vmatprep.subr.bf16.mxu0 0
  %792 = vmatpush1.bf16.msra.mxu0 0
  %793 = vmatprep.subr.bf16.mxu0 0
  %794 = vmatpush1.bf16.msra.mxu0 0
  %795 = vmatprep.subr.bf16.mxu0 0
  %796 = vmatpush1.bf16.msra.mxu0 0
  %797 = vmatprep.subr.bf16.mxu0 0
  %798 = vmatpush1.bf16.msra.mxu0 0
  %799 = vmatprep.subr.bf16.mxu0 0
  %800 = vmatpush1.bf16.msra.mxu0 0
  %801 = vmatprep.subr.bf16.mxu0 0
  %802 = vmatpush1.bf16.msra.mxu0 0
  %803 = vmatprep.subr.bf16.mxu0 0
  %804 = vmatpush1.bf16.msra.mxu0 0
  %805 = vmatprep.mubr.bf16.mxu0 0
  %806 = vmatmul.mubr.bf16.gmra.mrb[0].mxu0 %v767
  %v807 = vpop.f32.mrb[0].mxu0
  %v808 = vadd.f32 %v754, %v807
  %v809 = vpop.f32.mrb[0].mxu0
  %v810 = vpop.f32.mrb[0].mxu0
  %v811 = vpop.f32.mrb[0].mxu0
  %812 = vdwg.mxu0
  %v813 = vmax.f32 %v808, 0.0
  %v814 = vpack.c.bf16 %v813, %v813
  %v815 = vld [vmem:[%s5] sm:$0xf]
  %v816 = vld [vmem:[%s5 + $0x4] sm:$0xf]
  %v817 = vld [vmem:[%s5 + $0x8] sm:$0x3]
  %v818 = vld [vmem:[%s6] sm:$0x1]
  %v820 = vlaneseq
  %v821 = vshrl.u32 %v820, 7
  %v822 = vsub.s32 0, %v821
  %v823 = vrot.slane %v818, %v822
  %v828 = vunpack.c.l.b16 %v815
  %v829 = vunpack.c.l.b16 %v816
  %v830 = vunpack.c.l.b16 %v817
  %v831 = vpack.c.b16 %v829, %v828
  %v832 = vpack.c.b16 %v830, %v830
  %v835 = vsel %vm765, %v814, 0
  %v838 = vsel %vm769, %v832, 0
  %840 = vmatprep.subr.bf16.mxu0 0
  %841 = vmatpush1.bf16.msra.mxu0 %v831
  %842 = vmatprep.subr.bf16.mxu0 0
  %843 = vmatpush1.bf16.msra.mxu0 %v838
  %844 = vmatprep.subr.bf16.mxu0 0
  %845 = vmatpush1.bf16.msra.mxu0 0
  %846 = vmatprep.subr.bf16.mxu0 0
  %847 = vmatpush1.bf16.msra.mxu0 0
  %848 = vmatprep.subr.bf16.mxu0 0
  %849 = vmatpush1.bf16.msra.mxu0 0
  %850 = vmatprep.subr.bf16.mxu0 0
  %851 = vmatpush1.bf16.msra.mxu0 0
  %852 = vmatprep.subr.bf16.mxu0 0
  %853 = vmatpush1.bf16.msra.mxu0 0
  %854 = vmatprep.subr.bf16.mxu0 0
  %855 = vmatpush1.bf16.msra.mxu0 0
  %856 = vmatprep.subr.bf16.mxu0 0
  %857 = vmatpush1.bf16.msra.mxu0 0
  %858 = vmatprep.subr.bf16.mxu0 0
  %859 = vmatpush1.bf16.msra.mxu0 0
  %860 = vmatprep.subr.bf16.mxu0 0
  %861 = vmatpush1.bf16.msra.mxu0 0
  %862 = vmatprep.subr.bf16.mxu0 0
  %863 = vmatpush1.bf16.msra.mxu0 0
  %864 = vmatprep.subr.bf16.mxu0 0
  %865 = vmatpush1.bf16.msra.mxu0 0
  %866 = vmatprep.subr.bf16.mxu0 0
  %867 = vmatpush1.bf16.msra.mxu0 0
  %868 = vmatprep.subr.bf16.mxu0 0
  %869 = vmatpush1.bf16.msra.mxu0 0
  %870 = vmatprep.subr.bf16.mxu0 0
  %871 = vmatpush1.bf16.msra.mxu0 0
  %872 = vmatprep.mubr.bf16.mxu0 0
  %873 = vmatmul.mubr.bf16.gmra.mrb[0].mxu0 %v835
  %v874 = vpop.f32.mrb[0].mxu0
  %v875 = vadd.f32 %v823, %v874
  %v876 = vpop.f32.mrb[0].mxu0
  %v877 = vpop.f32.mrb[0].mxu0
  %v878 = vpop.f32.mrb[0].mxu0
  %879 = vdwg.mxu0
  %v880 = vmax.f32 %v875, 0.0
  %v881 = vpack.c.bf16 %v880, %v880
  %v882 = vld [vmem:[%s7] sm:$0xf]
  %v883 = vld [vmem:[%s7 + $0x4] sm:$0xf]
  %v884 = vld [vmem:[%s7 + $0x8] sm:$0x3]
  %v885 = vld [vmem:[%s8] sm:$0x1]
  %v887 = vlaneseq
  %v888 = vshrl.u32 %v887, 7
  %v889 = vsub.s32 0, %v888
  %v890 = vrot.slane %v885, %v889
  %v895 = vunpack.c.l.b16 %v882
  %v896 = vunpack.c.l.b16 %v883
  %v897 = vunpack.c.l.b16 %v884
  %v898 = vpack.c.b16 %v896, %v895
  %v899 = vpack.c.b16 %v897, %v897
  %v902 = vsel %vm765, %v881, 0
  %v905 = vsel %vm769, %v899, 0
  %907 = vmatprep.subr.bf16.mxu0 0
  %908 = vmatpush1.bf16.msra.mxu0 %v898
  %909 = vmatprep.subr.bf16.mxu0 0
  %910 = vmatpush1.bf16.msra.mxu0 %v905
  %911 = vmatprep.subr.bf16.mxu0 0
  %912 = vmatpush1.bf16.msra.mxu0 0
  %913 = vmatprep.subr.bf16.mxu0 0
  %914 = vmatpush1.bf16.msra.mxu0 0
  %915 = vmatprep.subr.bf16.mxu0 0
  %916 = vmatpush1.bf16.msra.mxu0 0
  %917 = vmatprep.subr.bf16.mxu0 0
  %918 = vmatpush1.bf16.msra.mxu0 0
  %919 = vmatprep.subr.bf16.mxu0 0
  %920 = vmatpush1.bf16.msra.mxu0 0
  %921 = vmatprep.subr.bf16.mxu0 0
  %922 = vmatpush1.bf16.msra.mxu0 0
  %923 = vmatprep.subr.bf16.mxu0 0
  %924 = vmatpush1.bf16.msra.mxu0 0
  %925 = vmatprep.subr.bf16.mxu0 0
  %926 = vmatpush1.bf16.msra.mxu0 0
  %927 = vmatprep.subr.bf16.mxu0 0
  %928 = vmatpush1.bf16.msra.mxu0 0
  %929 = vmatprep.subr.bf16.mxu0 0
  %930 = vmatpush1.bf16.msra.mxu0 0
  %931 = vmatprep.subr.bf16.mxu0 0
  %932 = vmatpush1.bf16.msra.mxu0 0
  %933 = vmatprep.subr.bf16.mxu0 0
  %934 = vmatpush1.bf16.msra.mxu0 0
  %935 = vmatprep.subr.bf16.mxu0 0
  %936 = vmatpush1.bf16.msra.mxu0 0
  %937 = vmatprep.subr.bf16.mxu0 0
  %938 = vmatpush1.bf16.msra.mxu0 0
  %939 = vmatprep.mubr.bf16.mxu0 0
  %940 = vmatmul.mubr.bf16.gmra.mrb[0].mxu0 %v902
  %v941 = vpop.f32.mrb[0].mxu0
  %v942 = vadd.f32 %v890, %v941
  %v943 = vpop.f32.mrb[0].mxu0
  %v944 = vpop.f32.mrb[0].mxu0
  %v945 = vpop.f32.mrb[0].mxu0
  %946 = vdwg.mxu0
  %947 = vst [vmem:[%s9] sm:$0xff] %v942
  // Predicated region
  $region38: #{tiny_mlp_forward.1} parent=0 // pred_check
    _
  $region39: #{tiny_mlp_forward.1} parent=0 // pred_check_branch
    %949 = sbr.rel (0) target = $region41
  $region40: #{tiny_mlp_forward.1} parent=0 // pred_region
    _
  $region41: #{tiny_mlp_forward.1} parent=0 // pred_fallthru
    _
  // Predicated region
  $region42: #{tiny_mlp_forward.1} parent=0 // pred_check
    _
  $region43: #{tiny_mlp_forward.1} parent=0 // pred_check_branch
    %951 = sbr.rel (0) target = $region45
  $region44: #{tiny_mlp_forward.1} parent=0 // pred_region
    _
  $region45: #{tiny_mlp_forward.1} parent=0 // pred_fallthru
    _

</llo_original>
